<compile_context>
chip_gen: v7x
topology: tpu7x:2x2x1
jax: 0.10.0
libtpu: 0.0.40
codegen_flags: <defaults>
</compile_context>

<pallas_src>
import functools

import jax
import jax.numpy as jnp
from jax import lax
from jax.experimental import pallas as pl
from jax.experimental.pallas import tpu as pltpu


NCORES = 2  # batch shards: maps to the two TensorCores on v7x via the
            # "parallel" grid axis; a cheap sequential outer loop elsewhere.


def graph_gen_kernel(x_ref, w1_hbm, b1_ref, w2_hbm, b2_ref, out_ref,
                     w1_vmem, w2_vmem, acc_ref, dma_sem,
                     *, batch_size, tile_b, compute_dtype):
    """One grid step == one batch tile of one batch shard (all F fields fused).

    x_ref   : (TB, d_pad)   batch tile of feature embeddings (zero-padded)
    w1_hbm  : (d_pad, FF)   packed layer-1 weights, left in HBM (pl.ANY)
    b1_ref  : (1, FF) f32   layer-1 bias with the one-hot row folded in
    w2_hbm  : (FF, FF)      block-diagonal layer-2 weights, left in HBM
    b2_ref  : (1, FF) f32
    out_ref : (8, FF) f32   this shard's per-sublane batch partial sums
    w1_vmem / w2_vmem       single-buffered VMEM staging for the weights
    acc_ref : (8, FF) f32   running per-sublane batch-sum of relu(layer2)
    """
    c = pl.program_id(0)            # batch shard (parallel axis)
    bi = pl.program_id(1)           # batch tile within the shard (reduction)
    nb = pl.num_programs(1)

    @pl.when(bi == 0)
    def _stage_and_init():
        # One-time (per shard) staging of the grid-invariant weights into
        # single-buffered VMEM scratch; overlap the two DMAs.
        cp1 = pltpu.make_async_copy(w1_hbm, w1_vmem, dma_sem.at[0])
        cp2 = pltpu.make_async_copy(w2_hbm, w2_vmem, dma_sem.at[1])
        cp1.start()
        cp2.start()
        cp1.wait()
        cp2.wait()
        acc_ref[...] = jnp.zeros_like(acc_ref)

    # Fused layer 1 + layer 2 for all F fields at once (bf16 MXU, f32 accum).
    h = jnp.dot(x_ref[...], w1_vmem[...], preferred_element_type=jnp.float32)
    h = jnp.maximum(h + b1_ref[...], 0.0)                      # (TB, FF) f32
    h = jnp.dot(h.astype(compute_dtype), w2_vmem[...],
                preferred_element_type=jnp.float32)
    h = jnp.maximum(h + b2_ref[...], 0.0)                      # (TB, FF) f32

    tile_start = (c * nb + bi) * tile_b

    def accumulate(hv):
        # Per-sublane partial sums: (TB, FF) -> (8, FF); no cross-sublane
        # reduce and no 1-valid-sublane RMW on the hot path.
        part = hv[0:8, :]
        for j in range(1, tile_b // 8):
            part = part + hv[8 * j:8 * (j + 1), :]
        acc_ref[...] += part

    @pl.when(tile_start + tile_b <= batch_size)     # fully-valid tile (common)
    def _acc_full():
        accumulate(h)

    @pl.when(tile_start + tile_b > batch_size)      # tile contains padded rows
    def _acc_masked():
        row = tile_start + lax.broadcasted_iota(jnp.int32, (tile_b, 1), 0)
        accumulate(jnp.where(row < batch_size, h, 0.0))

    @pl.when(bi == nb - 1)
    def _finalize():
        out_ref[...] = acc_ref[...]                 # per-shard (8, FF) partials


def _round_up(v, m):
    return (v + m - 1) // m * m


def _cdiv(a, b):
    return (a + b - 1) // b


def _vmem_capacity_bytes():
    try:
        return int(pltpu.get_tpu_info().vmem_capacity_bytes)
    except Exception:
        return 64 << 20          # conservative (v7x-sized) fallback


def graph_generator_forward(feature_emb, params, *,
                            compute_dtype=jnp.bfloat16, max_batch_tile=None):
    """Pallas implementation of GraphGenerator.forward."""
    W1, b1, W2, b2, W3, b3 = params
    B, d_in = feature_emb.shape
    F_ = W1.shape[0]
    FF = F_ * F_

    # ---- wrapper-side weight preprocessing (one-time, XLA-side) ----
    # Layer 1: pack all fields' main weights column-block-wise:
    #   W1_flat[d, i*F + f] = W1[i, d, f]
    W1_main = W1[:, :d_in, :]                                    # (F, d_in, F)
    W1_flat = jnp.transpose(W1_main, (1, 0, 2)).reshape(d_in, FF)
    # one-hot contribution == row (d_in + i) of W1_i -> fold into the bias
    onehot_rows = W1[jnp.arange(F_), d_in + jnp.arange(F_), :]   # (F, F)
    b1_flat = (b1 + onehot_rows).reshape(1, FF).astype(jnp.float32)
    # Layer 2: block-diagonal weights so the per-field matmuls fuse into one.
    eye = jnp.eye(F_, dtype=W2.dtype)
    W2_bd = jnp.einsum('ij,ifg->ifjg', eye, W2).reshape(FF, FF)
    b2_flat = b2.reshape(1, FF).astype(jnp.float32)

    # Lane-dense K for layer 1.
    d_pad = _round_up(d_in, 128)
    if d_pad != d_in:
        W1_flat = jnp.pad(W1_flat, ((0, d_pad - d_in), (0, 0)))

    # ---- generation-aware sizing ----
    vmem_cap = _vmem_capacity_bytes()
    if max_batch_tile is None:
        max_batch_tile = 1024 if vmem_cap >= (96 << 20) else 512
    # Keep the f32 (tile_b, FF) layer intermediates comfortably small.
    while max_batch_tile > 8 and max_batch_tile * FF * 4 > (4 << 20):
        max_batch_tile //= 2

    # Balanced batch tiles split over NCORES shards (no near-empty last tile).
    n_tiles = NCORES * max(1, _cdiv(_cdiv(B, NCORES), max_batch_tile))
    tb = _round_up(_cdiv(B, n_tiles), 8)
    b_pad = n_tiles * tb
    nb_inner = n_tiles // NCORES

    x = feature_emb.astype(jnp.float32)
    x = jnp.pad(x, ((0, b_pad - B), (0, d_pad - d_in)))
    x = x.astype(compute_dtype)
    W1_c = W1_flat.astype(compute_dtype)
    W2_c = W2_bd.astype(compute_dtype)

    bytes_c = jnp.dtype(compute_dtype).itemsize
    vmem_need = (2 * tb * d_pad * bytes_c             # x tile (double-buffered)
                 + (d_pad * FF + FF * FF) * bytes_c   # staged weights (single)
                 + (2 * 2 + 2 * 8 + 8) * FF * 4       # biases / out / acc
                 + 4 * tb * FF * 4                    # layer intermediates
                 + (2 << 20))                         # headroom
    vmem_limit = int(min(max(vmem_need, 8 << 20), int(vmem_cap * 0.9)))

    kern = functools.partial(graph_gen_kernel, batch_size=B, tile_b=tb,
                             compute_dtype=compute_dtype)

    partial_sums = pl.pallas_call(
        kern,
        out_shape=jax.ShapeDtypeStruct((NCORES * 8, FF), jnp.float32),
        grid_spec=pltpu.PrefetchScalarGridSpec(
            num_scalar_prefetch=0,
            grid=(NCORES, nb_inner),
            in_specs=[
                pl.BlockSpec((tb, d_pad),
                             lambda c, b: (c * nb_inner + b, 0)),   # x tile
                pl.BlockSpec(memory_space=pl.ANY),                  # W1 (staged)
                pl.BlockSpec((1, FF), lambda c, b: (0, 0)),         # b1
                pl.BlockSpec(memory_space=pl.ANY),                  # W2 (staged)
                pl.BlockSpec((1, FF), lambda c, b: (0, 0)),         # b2
            ],
            out_specs=pl.BlockSpec((8, FF), lambda c, b: (c, 0)),
            scratch_shapes=[
                pltpu.VMEM((d_pad, FF), compute_dtype),   # staged W1
                pltpu.VMEM((FF, FF), compute_dtype),      # staged W2
                pltpu.VMEM((8, FF), jnp.float32),         # accumulator
                pltpu.SemaphoreType.DMA((2,)),
            ],
        ),
        compiler_params=pltpu.CompilerParams(
            dimension_semantics=("parallel", "arbitrary"),
            vmem_limit_bytes=vmem_limit),
    )(x, W1_c, b1_flat, W2_c, b2_flat)

    # Wrapper-side finalize: combine shard/sublane partials, scale by 1/B, and
    # apply the (tiny, affine) third layer:  mean(h2 @ W3 + b3) == mean(h2) @ W3 + b3.
    mean_h2 = (jnp.sum(partial_sums, axis=0) / B).reshape(F_, F_)    # (F, F)
    graph = (jnp.einsum('if,ifg->ig', mean_h2, W3.astype(jnp.float32))
             + b3.astype(jnp.float32))                               # (F, F)
    # torch: graph.unsqueeze(0).repeat(task_size, 1, 1) with task_size == B.
    return jnp.broadcast_to(graph[None, :, :], (B, F_, F_))


def init_params(key, num_item_fields, num_fields, embedding_dim):
    """Deterministic PyTorch-Linear-style init (uniform(+-1/sqrt(fan_in)))."""
    d_in = num_item_fields * embedding_dim
    d_aug = d_in + num_fields
    F_ = num_fields
    ks = jax.random.split(key, 6)

    def u(k, shape, fan_in):
        bound = 1.0 / jnp.sqrt(jnp.float32(fan_in))
        return jax.random.uniform(k, shape, jnp.float32, -bound, bound)

    W1 = u(ks[0], (F_, d_aug, F_), d_aug)   # x @ W convention (in, out)
    b1 = u(ks[1], (F_, F_), d_aug)
    W2 = u(ks[2], (F_, F_, F_), F_)
    b2 = u(ks[3], (F_, F_), F_)
    W3 = u(ks[4], (F_, F_, F_), F_)
    b3 = u(ks[5], (F_, F_), F_)
    return (W1, b1, W2, b2, W3, b3)


def reference_forward(feature_emb, params):
    """Pure-JAX transcription of the PyTorch forward, for verification."""
    W1, b1, W2, b2, W3, b3 = params
    B = feature_emb.shape[0]
    F_ = W1.shape[0]
    rows = []
    for i in range(F_):
        onehot = jnp.zeros((B, F_), jnp.float32).at[:, i].set(1.0)
        xi = jnp.concatenate([feature_emb, onehot], axis=1)
        h = jnp.maximum(xi @ W1[i] + b1[i], 0.0)
        h = jnp.maximum(h @ W2[i] + b2[i], 0.0)
        h = h @ W3[i] + b3[i]
        rows.append(h)
    graph = jnp.stack(rows, axis=1)          # (B, F, F)
    mean_graph = jnp.mean(graph, axis=0)     # (F, F)  (.squeeze() is a no-op)
    return jnp.tile(mean_graph[None], (B, 1, 1))


if __name__ == "__main__":
    # Small shapes consistent with the module.
    B = 2
    num_item_fields = 3
    num_fields = 4
    embedding_dim = 8
    d_in = num_item_fields * embedding_dim   # 24

    key = jax.random.PRNGKey(0)
    k_x, k_p = jax.random.split(key)
    feature_emb = jax.random.normal(k_x, (B, d_in), jnp.float32)
    params = init_params(k_p, num_item_fields, num_fields, embedding_dim)

    ref = reference_forward(feature_emb, params)

    # f32 path: tight check of the fused packing / masking / reduction.
    out_f32 = jax.block_until_ready(
        graph_generator_forward(feature_emb, params, compute_dtype=jnp.float32))
    assert out_f32.shape == (B, num_fields, num_fields), out_f32.shape
    assert jnp.allclose(out_f32, ref, atol=1e-4, rtol=1e-4), (
        f"f32 max err {jnp.max(jnp.abs(out_f32 - ref))}")

    # bf16 path (default, MXU-native): looser tolerance matching bf16 inputs.
    out_bf16 = jax.block_until_ready(graph_generator_forward(feature_emb, params))
    assert out_bf16.shape == (B, num_fields, num_fields), out_bf16.shape
    assert jnp.allclose(out_bf16, ref, atol=3e-2, rtol=3e-2), (
        f"bf16 max err {jnp.max(jnp.abs(out_bf16 - ref))}")

    print("KERNEL_OK")
</pallas_src>

<mosaic_0001>
module attributes {stable_mosaic.version = 11 : i64} {
  func.func @graph_gen_kernel(%arg0: i32, %arg1: i32, %arg2: memref<8x128xf32, #tpu.memory_space<vmem>>, %arg3: memref<128x16xf32, #tpu.memory_space<any>>, %arg4: memref<1x16xf32, #tpu.memory_space<vmem>>, %arg5: memref<16x16xf32, #tpu.memory_space<any>>, %arg6: memref<1x16xf32, #tpu.memory_space<vmem>>, %arg7: memref<8x16xf32, #tpu.memory_space<vmem>>, %arg8: memref<128x16xf32, #tpu.memory_space<vmem>>, %arg9: memref<16x16xf32, #tpu.memory_space<vmem>>, %arg10: memref<8x16xf32, #tpu.memory_space<vmem>>, %arg11: memref<2x!tpu.dma_semaphore, #tpu.memory_space<semaphore_mem>>) attributes {dimension_semantics = [#tpu.dimension_semantics<parallel>, #tpu.dimension_semantics<arbitrary>], iteration_bounds = array<i64: 2, 1>, scalar_prefetch = 0 : i64, scratch_operands = 4 : i64, tpu.core_type = #tpu.core_type<tc>, window_params = [{transform_indices = @transform_0, window_bounds = array<i64: 8, 128>}, {}, {pipeline_mode = #tpu.pipeline_mode<synchronous>, transform_indices = @transform_2, window_bounds = array<i64: 1, 16>}, {}, {pipeline_mode = #tpu.pipeline_mode<synchronous>, transform_indices = @transform_4, window_bounds = array<i64: 1, 16>}, {transform_indices = @transform_5, window_bounds = array<i64: 8, 16>}]} {
    %c0_i32 = arith.constant 0 : i32
    %0 = arith.cmpi eq, %arg1, %c0_i32 : i32
    %1 = arith.extui %0 : i1 to i32
    %c0_i32_0 = arith.constant 0 : i32
    %2 = arith.cmpi ne, %1, %c0_i32_0 : i32
    scf.if %2 {
      %c0_i32_20 = arith.constant 0 : i32
      %32 = tpu.memref_slice %arg11[%c0_i32_20] : memref<2x!tpu.dma_semaphore, #tpu.memory_space<semaphore_mem>> -> memref<1x!tpu.dma_semaphore, #tpu.memory_space<semaphore_mem>>
      %33 = tpu.memref_squeeze %32 : memref<1x!tpu.dma_semaphore, #tpu.memory_space<semaphore_mem>> -> memref<!tpu.dma_semaphore, #tpu.memory_space<semaphore_mem>>
      tpu.enqueue_dma source(%arg3 : memref<128x16xf32, #tpu.memory_space<any>>) target(%arg8 : memref<128x16xf32, #tpu.memory_space<vmem>>) target_semaphore(%33 : memref<!tpu.dma_semaphore, #tpu.memory_space<semaphore_mem>>)
      %c1_i32_21 = arith.constant 1 : i32
      %34 = tpu.memref_slice %arg11[%c1_i32_21] : memref<2x!tpu.dma_semaphore, #tpu.memory_space<semaphore_mem>> -> memref<1x!tpu.dma_semaphore, #tpu.memory_space<semaphore_mem>>
      %35 = tpu.memref_squeeze %34 : memref<1x!tpu.dma_semaphore, #tpu.memory_space<semaphore_mem>> -> memref<!tpu.dma_semaphore, #tpu.memory_space<semaphore_mem>>
      tpu.enqueue_dma source(%arg5 : memref<16x16xf32, #tpu.memory_space<any>>) target(%arg9 : memref<16x16xf32, #tpu.memory_space<vmem>>) target_semaphore(%35 : memref<!tpu.dma_semaphore, #tpu.memory_space<semaphore_mem>>)
      %c0_i32_22 = arith.constant 0 : i32
      %36 = tpu.memref_slice %arg11[%c0_i32_22] : memref<2x!tpu.dma_semaphore, #tpu.memory_space<semaphore_mem>> -> memref<1x!tpu.dma_semaphore, #tpu.memory_space<semaphore_mem>>
      %37 = tpu.memref_squeeze %36 : memref<1x!tpu.dma_semaphore, #tpu.memory_space<semaphore_mem>> -> memref<!tpu.dma_semaphore, #tpu.memory_space<semaphore_mem>>
      tpu.wait_dma2 semaphore(%37 : memref<!tpu.dma_semaphore, #tpu.memory_space<semaphore_mem>>) src(%arg3 : memref<128x16xf32, #tpu.memory_space<any>>) dst(%arg8 : memref<128x16xf32, #tpu.memory_space<vmem>>)
      %c1_i32_23 = arith.constant 1 : i32
      %38 = tpu.memref_slice %arg11[%c1_i32_23] : memref<2x!tpu.dma_semaphore, #tpu.memory_space<semaphore_mem>> -> memref<1x!tpu.dma_semaphore, #tpu.memory_space<semaphore_mem>>
      %39 = tpu.memref_squeeze %38 : memref<1x!tpu.dma_semaphore, #tpu.memory_space<semaphore_mem>> -> memref<!tpu.dma_semaphore, #tpu.memory_space<semaphore_mem>>
      tpu.wait_dma2 semaphore(%39 : memref<!tpu.dma_semaphore, #tpu.memory_space<semaphore_mem>>) src(%arg5 : memref<16x16xf32, #tpu.memory_space<any>>) dst(%arg9 : memref<16x16xf32, #tpu.memory_space<vmem>>)
      %cst_24 = arith.constant 0.000000e+00 : f32
      %40 = vector.broadcast %cst_24 : f32 to vector<8x16xf32>
      %c0_25 = arith.constant 0 : index
      %c0_26 = arith.constant 0 : index
      %41 = vector.load %arg10[%c0_25, %c0_26] : memref<8x16xf32, #tpu.memory_space<vmem>>, vector<8x16xf32>
      tpu.vector_store %arg10[%c0_25, %c0_26], %40 {strides = array<i32>} : memref<8x16xf32, #tpu.memory_space<vmem>>, vector<8x16xf32>,
    } else {
    }
    %c0 = arith.constant 0 : index
    %c0_1 = arith.constant 0 : index
    %3 = vector.load %arg2[%c0, %c0_1] : memref<8x128xf32, #tpu.memory_space<vmem>>, vector<8x128xf32>
    %c0_2 = arith.constant 0 : index
    %c0_3 = arith.constant 0 : index
    %4 = vector.load %arg8[%c0_2, %c0_3] : memref<128x16xf32, #tpu.memory_space<vmem>>, vector<128x16xf32>
    %cst = arith.constant dense<0.000000e+00> : vector<8x16xf32>
    %5 = tpu.matmul %3, %4, %cst {dimension_numbers = #tpu.dot_dimension_numbers<[1], [0], [0], [1], [0, 0, 1, 1], [], []>} : vector<8x128xf32>, vector<128x16xf32>, vector<8x16xf32> -> vector<8x16xf32>
    %c0_4 = arith.constant 0 : index
    %c0_5 = arith.constant 0 : index
    %6 = vector.load %arg4[%c0_4, %c0_5] : memref<1x16xf32, #tpu.memory_space<vmem>>, vector<1x16xf32>
    %7 = vector.broadcast %6 : vector<1x16xf32> to vector<8x16xf32>
    %8 = arith.addf %5, %7 : vector<8x16xf32>
    %cst_6 = arith.constant 0.000000e+00 : f32
    %9 = vector.broadcast %cst_6 : f32 to vector<8x16xf32>
    %10 = arith.maximumf %8, %9 : vector<8x16xf32>
    %c0_7 = arith.constant 0 : index
    %c0_8 = arith.constant 0 : index
    %11 = vector.load %arg9[%c0_7, %c0_8] : memref<16x16xf32, #tpu.memory_space<vmem>>, vector<16x16xf32>
    %cst_9 = arith.constant dense<0.000000e+00> : vector<8x16xf32>
    %12 = tpu.matmul %10, %11, %cst_9 {dimension_numbers = #tpu.dot_dimension_numbers<[1], [0], [0], [1], [0, 0, 1, 1], [], []>} : vector<8x16xf32>, vector<16x16xf32>, vector<8x16xf32> -> vector<8x16xf32>
    %c0_10 = arith.constant 0 : index
    %c0_11 = arith.constant 0 : index
    %13 = vector.load %arg6[%c0_10, %c0_11] : memref<1x16xf32, #tpu.memory_space<vmem>>, vector<1x16xf32>
    %14 = vector.broadcast %13 : vector<1x16xf32> to vector<8x16xf32>
    %15 = arith.addf %12, %14 : vector<8x16xf32>
    %cst_12 = arith.constant 0.000000e+00 : f32
    %16 = vector.broadcast %cst_12 : f32 to vector<8x16xf32>
    %17 = arith.maximumf %15, %16 : vector<8x16xf32>
    %c1_i32 = arith.constant 1 : i32
    %18 = arith.muli %arg0, %c1_i32 : i32
    %19 = arith.addi %18, %arg1 : i32
    %c8_i32 = arith.constant 8 : i32
    %20 = arith.muli %19, %c8_i32 : i32
    %c8_i32_13 = arith.constant 8 : i32
    %21 = arith.addi %20, %c8_i32_13 : i32
    %c2_i32 = arith.constant 2 : i32
    %22 = arith.cmpi sle, %21, %c2_i32 : i32
    %23 = arith.extui %22 : i1 to i32
    %c0_i32_14 = arith.constant 0 : i32
    %24 = arith.cmpi ne, %23, %c0_i32_14 : i32
    scf.if %24 {
      %c0_20 = arith.constant 0 : index
      %c0_21 = arith.constant 0 : index
      %32 = vector.load %arg10[%c0_20, %c0_21] : memref<8x16xf32, #tpu.memory_space<vmem>>, vector<8x16xf32>
      %33 = arith.addf %32, %17 : vector<8x16xf32>
      %c0_22 = arith.constant 0 : index
      %c0_23 = arith.constant 0 : index
      %34 = vector.load %arg10[%c0_22, %c0_23] : memref<8x16xf32, #tpu.memory_space<vmem>>, vector<8x16xf32>
      tpu.vector_store %arg10[%c0_22, %c0_23], %33 {strides = array<i32>} : memref<8x16xf32, #tpu.memory_space<vmem>>, vector<8x16xf32>,
    } else {
    }
    %c8_i32_15 = arith.constant 8 : i32
    %25 = arith.addi %20, %c8_i32_15 : i32
    %c2_i32_16 = arith.constant 2 : i32
    %26 = arith.cmpi sgt, %25, %c2_i32_16 : i32
    %27 = arith.extui %26 : i1 to i32
    %c0_i32_17 = arith.constant 0 : i32
    %28 = arith.cmpi ne, %27, %c0_i32_17 : i32
    scf.if %28 {
      %32 = tpu.iota {dimensions = array<i32: 0>} : vector<8x1xi32>
      %33 = vector.broadcast %20 : i32 to vector<8x1xi32>
      %34 = arith.addi %33, %32 : vector<8x1xi32>
      %c2_i32_20 = arith.constant 2 : i32
      %35 = vector.broadcast %c2_i32_20 : i32 to vector<8x1xi32>
      %36 = arith.cmpi slt, %34, %35 : vector<8x1xi32>
      %cst_21 = arith.constant 0.000000e+00 : f32
      %37 = vector.shape_cast %36 : vector<8x1xi1> to vector<8x1xi1>
      %38 = vector.broadcast %37 : vector<8x1xi1> to vector<8x16xi1>
      %39 = vector.broadcast %cst_21 : f32 to vector<8x16xf32>
      %40 = arith.select %38, %17, %39 : vector<8x16xi1>, vector<8x16xf32>
      %c0_22 = arith.constant 0 : index
      %c0_23 = arith.constant 0 : index
      %41 = vector.load %arg10[%c0_22, %c0_23] : memref<8x16xf32, #tpu.memory_space<vmem>>, vector<8x16xf32>
      %42 = arith.addf %41, %40 : vector<8x16xf32>
      %c0_24 = arith.constant 0 : index
      %c0_25 = arith.constant 0 : index
      %43 = vector.load %arg10[%c0_24, %c0_25] : memref<8x16xf32, #tpu.memory_space<vmem>>, vector<8x16xf32>
      tpu.vector_store %arg10[%c0_24, %c0_25], %42 {strides = array<i32>} : memref<8x16xf32, #tpu.memory_space<vmem>>, vector<8x16xf32>,
    } else {
    }
    %c0_i32_18 = arith.constant 0 : i32
    %29 = arith.cmpi eq, %arg1, %c0_i32_18 : i32
    %30 = arith.extui %29 : i1 to i32
    %c0_i32_19 = arith.constant 0 : i32
    %31 = arith.cmpi ne, %30, %c0_i32_19 : i32
    scf.if %31 {
      %c0_20 = arith.constant 0 : index
      %c0_21 = arith.constant 0 : index
      %32 = vector.load %arg10[%c0_20, %c0_21] : memref<8x16xf32, #tpu.memory_space<vmem>>, vector<8x16xf32>
      %c0_22 = arith.constant 0 : index
      %c0_23 = arith.constant 0 : index
      %33 = vector.load %arg7[%c0_22, %c0_23] : memref<8x16xf32, #tpu.memory_space<vmem>>, vector<8x16xf32>
      tpu.vector_store %arg7[%c0_22, %c0_23], %32 {strides = array<i32>} : memref<8x16xf32, #tpu.memory_space<vmem>>, vector<8x16xf32>,
    } else {
    }
    return
  }
  func.func @transform_0(%arg0: i32, %arg1: i32) -> (i32, i32) {
    %c1_i32 = arith.constant 1 : i32
    %0 = arith.muli %arg0, %c1_i32 : i32
    %1 = arith.addi %0, %arg1 : i32
    %c0_i32 = arith.constant 0 : i32
    %c0_i32_0 = arith.constant 0 : i32
    return %1, %c0_i32 : i32, i32
  }
  func.func @transform_2(%arg0: i32, %arg1: i32) -> (i32, i32) {
    %c0_i32 = arith.constant 0 : i32
    %c0_i32_0 = arith.constant 0 : i32
    %c0_i32_1 = arith.constant 0 : i32
    return %c0_i32, %c0_i32_0 : i32, i32
  }
  func.func @transform_4(%arg0: i32, %arg1: i32) -> (i32, i32) {
    %c0_i32 = arith.constant 0 : i32
    %c0_i32_0 = arith.constant 0 : i32
    %c0_i32_1 = arith.constant 0 : i32
    return %c0_i32, %c0_i32_0 : i32, i32
  }
  func.func @transform_5(%arg0: i32, %arg1: i32) -> (i32, i32) {
    %c0_i32 = arith.constant 0 : i32
    %c0_i32_0 = arith.constant 0 : i32
    return %arg0, %c0_i32 : i32, i32
  }
}

</mosaic_0001>

<llo_original>
// kernel: tpu_custom_call.1
$region0: #{tpu_custom_call.1}
  #allocation0 [shape = 'u32[]', space=smem, size = 0x4, offset = 0x4, fixed_abs, tag = 'smem constant byte address 0x4 - core index']
  #allocation1 [shape = 'u32[144,128]{1,0:T(1,128)}', space=vmem, size = 0x12000, scoped, tag = 'internal scratch']
  #allocation2 [shape = 'f32[128,16]{1,0:T(8,128)}', space=vmem, size = 0x10000, scoped, tag = 'scratch operand']
  #allocation3 [shape = 'f32[16,16]{1,0:T(8,128)}', space=vmem, size = 0x2000, scoped, tag = 'scratch operand']
  #allocation4 [shape = 'f32[8,16]{1,0:T(8,128)}', space=vmem, size = 0x1000, scoped, tag = 'scratch operand']
  #allocation5 [shape = 's32[2]{0}', space=sflag, size = 0x8, scoped, tag = 'scratch operand']
  #allocation8 [shape = 's32[]', space=sflag, size = 0x4, offset = 0, fixed_abs, tag = 'sflag constant byte address 0x0 - dummy sync flag']
  #allocation9 [shape = 's32[]', space=sflag, size = 0x4, offset = 0, fixed_abs, tag = 'sflag constant byte address 0x0 - dummy sync flag']
  %s0 = inlined_call_operand.vmem [shape: f32[16,128], index: 0, kind: input, shape index: {}]
  %s1 = inlined_call_operand.vmem [shape: f32[128,16], index: 1, kind: input, shape index: {}]
  %s2 = inlined_call_operand.vmem [shape: f32[1,16], index: 2, kind: input, shape index: {}]
  %s3 = inlined_call_operand.vmem [shape: f32[16,16], index: 3, kind: input, shape index: {}]
  %s4 = inlined_call_operand.vmem [shape: f32[1,16], index: 4, kind: input, shape index: {}]
  %s5 = inlined_call_operand.hbm [shape: f32[16,16], index: 5, kind: output, shape index: {}]
  %s6 = sld [smem:[#allocation0]]
  $region129: #{tpu_custom_call.1} parent=0
    _
  %s8 = ssub.s32 1, %s6
  %s9 = scalar_select 0, %s8, %s6
  $region1: #{tpu_custom_call.1} parent=0
    #allocation6 [shape = 'u8[8192]{0}', space=vmem, size = 0x2000, scoped, tag = 'output window, operand 0']
    #allocation7 [shape = 's32[2]{0}', space=sflag, size = 0x8, scoped, tag = 'scoped memory for tpu_custom_call.1']
    %10 = vsyncpa [#allocation7], 0
    %s11 = scalar_lea.sflag [#allocation7], 1
    %12 = vsyncpa %s11, 0
    loop: start=0, step=1, limit=4
    $region2: #{tpu_custom_call.1} parent=1 // loop_pre_header
      _
    $region3: #{tpu_custom_call.1} parent=1 // loop_header
      %s14 = sphi 0, %s18
      %p15 = scmp.ge.s32.totalorder %s14, 4
      %s21 = sphi 0, %s33
      %s22 = sphi 0, %s29
      %s23 = sphi 0, %s21
      %s24 = sphi 0, %s22
      %s25 = sphi 0, %s23
      %s26 = sphi 0, %s24
      %s38 = sphi 0, %s40
      %s41 = sphi 0, %s38
      %s42 = sphi 0, %s41
      %s58 = sphi 0, %s42
      %s62 = sphi 0, %s62
      %s64 = sphi 0, %s62
      %s65 = sphi 0, %s64
      %s79 = sphi 0, %s65
      %s83 = sphi 0, %s83
      %s85 = sphi 0, %s83
      %s86 = sphi 0, %s85
      %s100 = sphi 0, %s86
      %s106 = sphi 0, %s108
      %s109 = sphi 0, %s106
      %s110 = sphi 0, %s109
      %s126 = sphi 0, %s110
    $region4: #{tpu_custom_call.1} parent=1 // loop_header_branch
      %17 = sbr.rel (%p15) target = $region8
    $region5: #{tpu_custom_call.1} parent=1 // loop_body
      %s19 = ssub.s32 %s14, 1
      %s20 = ssub.s32 %s14, 2
      %s27 = sadd.s32 1, %s22
      %p28 = scmp.ge.s32.totalorder %s27, 1
      %s29 = scalar_select %p28, 0, %s27
      %s30 = sadd.s32 1, %s21
      %s31 = scalar_select %p28, %s30, %s21
      %p32 = scmp.ge.s32.totalorder %s31, 2
      %s33 = scalar_select %p32, 0, %s31
      %s34 = sadd.s32 %s21, %s22
      %s35 = sadd.s32 %s33, %s29
      %s36 = ssub.s32 %s34, %s35
      %p37 = scmp.eq.s32.totalorder %s36, 0
      %s39 = sadd.s32 %s38, 1
      %s40 = scalar_select %p37, %s38, %s39
      %p43 = pneg %p37
      %p44 = scmp.eq.s32.totalorder %s14, 1
      %p45 = por %p43, %p44
      %p46 = scmp.ne.s32.totalorder %s38, %s41
      %p47 = scmp.eq.s32.totalorder %s14, 0
      %p48 = por %p46, %p47
      %p49 = scmp.ne.s32.totalorder %s38, %s41
      %p50 = scmp.eq.s32.totalorder %s19, 1
      %p51 = por %p49, %p50
      %p52 = scmp.ne.s32.totalorder %s41, %s42
      %p53 = scmp.eq.s32.totalorder %s19, 0
      %p54 = por %p52, %p53
      %p55 = scmp.ne.s32.totalorder %s41, %s42
      %p56 = scmp.eq.s32.totalorder %s20, 1
      %p57 = por %p55, %p56
      %p59 = scmp.ne.s32.totalorder %s42, %s58
      %p60 = scmp.eq.s32.totalorder %s20, 0
      %p61 = por %p59, %p60
      %s63 = sadd.s32 %s62, 1
      %p66 = scmp.eq.s32.totalorder %s14, 1
      %p67 = scmp.ne.s32.totalorder %s62, %s64
      %p68 = scmp.eq.s32.totalorder %s14, 0
      %p69 = por %p67, %p68
      %p70 = scmp.ne.s32.totalorder %s62, %s64
      %p71 = scmp.eq.s32.totalorder %s19, 1
      %p72 = por %p70, %p71
      %p73 = scmp.ne.s32.totalorder %s64, %s65
      %p74 = scmp.eq.s32.totalorder %s19, 0
      %p75 = por %p73, %p74
      %p76 = scmp.ne.s32.totalorder %s64, %s65
      %p77 = scmp.eq.s32.totalorder %s20, 1
      %p78 = por %p76, %p77
      %p80 = scmp.ne.s32.totalorder %s65, %s79
      %p81 = scmp.eq.s32.totalorder %s20, 0
      %p82 = por %p80, %p81
      %s84 = sadd.s32 %s83, 1
      %p87 = scmp.eq.s32.totalorder %s14, 1
      %p88 = scmp.ne.s32.totalorder %s83, %s85
      %p89 = scmp.eq.s32.totalorder %s14, 0
      %p90 = por %p88, %p89
      %p91 = scmp.ne.s32.totalorder %s83, %s85
      %p92 = scmp.eq.s32.totalorder %s19, 1
      %p93 = por %p91, %p92
      %p94 = scmp.ne.s32.totalorder %s85, %s86
      %p95 = scmp.eq.s32.totalorder %s19, 0
      %p96 = por %p94, %p95
      %p97 = scmp.ne.s32.totalorder %s85, %s86
      %p98 = scmp.eq.s32.totalorder %s20, 1
      %p99 = por %p97, %p98
      %p101 = scmp.ne.s32.totalorder %s86, %s100
      %p102 = scmp.eq.s32.totalorder %s20, 0
      %p103 = por %p101, %p102
      %s104 = ssub.s32 %s21, %s33
      %p105 = scmp.eq.s32.totalorder %s104, 0
      %s107 = sadd.s32 %s106, 1
      %s108 = scalar_select %p105, %s106, %s107
      %p111 = pneg %p105
      %p112 = scmp.eq.s32.totalorder %s14, 1
      %p113 = por %p111, %p112
      %p114 = scmp.ne.s32.totalorder %s106, %s109
      %p115 = scmp.eq.s32.totalorder %s14, 0
      %p116 = por %p114, %p115
      %p117 = scmp.ne.s32.totalorder %s106, %s109
      %p118 = scmp.eq.s32.totalorder %s19, 1
      %p119 = por %p117, %p118
      %p120 = scmp.ne.s32.totalorder %s109, %s110
      %p121 = scmp.eq.s32.totalorder %s19, 0
      %p122 = por %p120, %p121
      %p123 = scmp.ne.s32.totalorder %s109, %s110
      %p124 = scmp.eq.s32.totalorder %s20, 1
      %p125 = por %p123, %p124
      %p127 = scmp.ne.s32.totalorder %s110, %s126
      %p128 = scmp.eq.s32.totalorder %s20, 0
      %p129 = por %p127, %p128
      %p130 = scmp.le.s32.totalorder 1, %s14
      %p131 = scmp.lt.s32.totalorder %s14, 3
      %p132 = pnand %p130, %p131
      %p133 = pneg %p132
      // Predicated region
      $region9: #{tpu_custom_call.1} parent=5 // pred_check
        _
      $region10: #{tpu_custom_call.1} parent=5 // pred_check_branch
        %135 = sbr.rel (%p132) target = $region12
      $region11: #{tpu_custom_call.1} parent=5 // pred_region
        %s136 = ssub.s32 %s14, 1
        // Predicated region
        $region13: #{tpu_custom_call.1} parent=11 // pred_check
          %p137 = pneg %p75
        $region14: #{tpu_custom_call.1} parent=11 // pred_check_branch
          %139 = sbr.rel (%p137) target = $region16
        $region15: #{tpu_custom_call.1} parent=11 // pred_region
          _
        $region16: #{tpu_custom_call.1} parent=11 // pred_fallthru
          _
        // Predicated region
        $region17: #{tpu_custom_call.1} parent=11 // pred_check
          %p140 = pneg %p96
        $region18: #{tpu_custom_call.1} parent=11 // pred_check_branch
          %142 = sbr.rel (%p140) target = $region20
        $region19: #{tpu_custom_call.1} parent=11 // pred_region
          _
        $region20: #{tpu_custom_call.1} parent=11 // pred_fallthru
          _
      $region12: #{tpu_custom_call.1} parent=5 // pred_fallthru
        _
      %p143 = scmp.lt.s32.totalorder %s14, 2
      // Predicated region
      $region21: #{tpu_custom_call.1} parent=5 // pred_check
        %p144 = pneg %p143
      $region22: #{tpu_custom_call.1} parent=5 // pred_check_branch
        %146 = sbr.rel (%p144) target = $region24
      $region23: #{tpu_custom_call.1} parent=5 // pred_region
        // Predicated region
        $region25: #{tpu_custom_call.1} parent=23 // pred_check
          %p147 = pneg %p48
        $region26: #{tpu_custom_call.1} parent=23 // pred_check_branch
          %149 = sbr.rel (%p147) target = $region28
        $region27: #{tpu_custom_call.1} parent=23 // pred_region
          %s150 = sadd.s32 %s21, %s22
          %p151 = scmp.lt.s32.totalorder %s150, 1
          %s152 = scalar_select %p151, %s150, 1
          %s153 = smul.addr %s152, 8
          %s154 = scalar_lea.vmem %s0, %s153
          %s155 = sadd.s32 %s21, %s22
        $region28: #{tpu_custom_call.1} parent=23 // pred_fallthru
          _
      $region24: #{tpu_custom_call.1} parent=5 // pred_fallthru
        _
      %p156 = scmp.le.s32.totalorder 1, %s14
      %p157 = scmp.lt.s32.totalorder %s14, 3
      %p158 = pnand %p156, %p157
      %p159 = pneg %p158
      // Predicated region
      $region29: #{tpu_custom_call.1} parent=5 // pred_check
        _
      $region30: #{tpu_custom_call.1} parent=5 // pred_check_branch
        %161 = sbr.rel (%p158) target = $region32
      $region31: #{tpu_custom_call.1} parent=5 // pred_region
        %s162 = ssub.s32 %s14, 1
        %s163 = sadd.s32 %s23, %s24
        %p164 = scmp.lt.s32.totalorder %s163, 1
        %s165 = scalar_select %p164, %s163, 1
        %s166 = smul.addr %s165, 8
        %s167 = scalar_lea.vmem %s0, %s166
        %p168 = pneg %p54
        %p169 = pneg %p51
        %p170 = pneg %p75
        %p171 = pneg %p72
        %p172 = pneg %p96
        %p173 = pneg %p93
        %p174 = pneg %p122
        %p175 = pneg %p119
        %s176 = sand.u32 %s109, 1
        %s177 = scalar_lea.sflag [#allocation7], %s176
        %s178 = sand.u32 %s109, 1
        %s179 = smul.addr %s178, 8
        %s180 = scalar_lea.vmem [#allocation6], %s179
        %s181 = sadd.s32 %s23, %s24
        %p182 = scmp.lt.s32.totalorder %s181, 1
        %s183 = scalar_select %p182, %s181, 1
        %s184 = smul.addr %s183, 8
        %s185 = scalar_lea.vmem %s0, %s184
        %s186 = sadd.s32 %s23, %s24
        %p187 = scmp.eq.s32.totalorder %s24, 0
        // Predicated region
        $region33: #{tpu_custom_call.1} parent=31 // pred_check
          %p188 = pneg %p187
        $region34: #{tpu_custom_call.1} parent=31 // pred_check_branch
          %190 = sbr.rel (%p188) target = $region36
        $region35: #{tpu_custom_call.1} parent=31 // pred_region
          %p192 = scmp.lt.u32.totalorder 128, 8
          %p193 = pneg %p192
          // Predicated region
          $region37: #{tpu_custom_call.1} parent=35 // pred_check
            _
          $region38: #{tpu_custom_call.1} parent=35 // pred_check_branch
            %195 = sbr.rel (%p192) target = $region40
          $region39: #{tpu_custom_call.1} parent=35 // pred_region
            %s210 = sand.u32 128, 7
            %p211 = scmp.eq.s32.totalorder %s210, 0
            // Predicated region
            $region52: #{tpu_custom_call.1} parent=39 // pred_check
              %p212 = pneg %p211
            $region53: #{tpu_custom_call.1} parent=39 // pred_check_branch
              %214 = sbr.rel (%p212) target = $region55
            $region54: #{tpu_custom_call.1} parent=39 // pred_region
              loop: start=0, step=1, limit=1
              $region56: #{tpu_custom_call.1} parent=54 // loop_pre_header
                _
              $region57: #{tpu_custom_call.1} parent=54 // loop_header
                %s216 = sphi 0, %s220
                %p217 = scmp.ge.s32.totalorder %s216, 1
                %s221 = sphi %s1, %s1
                %s222 = sphi [#allocation2], [#allocation2]
              $region58: #{tpu_custom_call.1} parent=54 // loop_header_branch
                %219 = sbr.rel (%p217) target = $region62
              $region59: #{tpu_custom_call.1} parent=54 // loop_body
                %v223 = vld [vmem:[%s221] sm:$0xff]
                %224 = vst [vmem:[%s222] sm:$0xff] %v223
                %v225 = vld [vmem:[%s221 + $0x8] sm:$0xff]
                %226 = vst [vmem:[%s222 + $0x8] sm:$0xff] %v225
                %v227 = vld [vmem:[%s221 + $0x10] sm:$0xff]
                %228 = vst [vmem:[%s222 + $0x10] sm:$0xff] %v227
                %v229 = vld [vmem:[%s221 + $0x18] sm:$0xff]
                %230 = vst [vmem:[%s222 + $0x18] sm:$0xff] %v229
                %v231 = vld [vmem:[%s221 + $0x20] sm:$0xff]
                %232 = vst [vmem:[%s222 + $0x20] sm:$0xff] %v231
                %v233 = vld [vmem:[%s221 + $0x28] sm:$0xff]
                %234 = vst [vmem:[%s222 + $0x28] sm:$0xff] %v233
                %v235 = vld [vmem:[%s221 + $0x30] sm:$0xff]
                %236 = vst [vmem:[%s222 + $0x30] sm:$0xff] %v235
                %v237 = vld [vmem:[%s221 + $0x38] sm:$0xff]
                %238 = vst [vmem:[%s222 + $0x38] sm:$0xff] %v237
                %v239 = vld [vmem:[%s221 + $0x40] sm:$0xff]
                %240 = vst [vmem:[%s222 + $0x40] sm:$0xff] %v239
                %v241 = vld [vmem:[%s221 + $0x48] sm:$0xff]
                %242 = vst [vmem:[%s222 + $0x48] sm:$0xff] %v241
                %v243 = vld [vmem:[%s221 + $0x50] sm:$0xff]
                %244 = vst [vmem:[%s222 + $0x50] sm:$0xff] %v243
                %v245 = vld [vmem:[%s221 + $0x58] sm:$0xff]
                %246 = vst [vmem:[%s222 + $0x58] sm:$0xff] %v245
                %v247 = vld [vmem:[%s221 + $0x60] sm:$0xff]
                %248 = vst [vmem:[%s222 + $0x60] sm:$0xff] %v247
                %v249 = vld [vmem:[%s221 + $0x68] sm:$0xff]
                %250 = vst [vmem:[%s222 + $0x68] sm:$0xff] %v249
                %v251 = vld [vmem:[%s221 + $0x70] sm:$0xff]
                %252 = vst [vmem:[%s222 + $0x70] sm:$0xff] %v251
                %v253 = vld [vmem:[%s221 + $0x78] sm:$0xff]
                %254 = vst [vmem:[%s222 + $0x78] sm:$0xff] %v253
              $region60: #{tpu_custom_call.1} parent=54 // loop_footer
                %s220 = sadd.s32 1, %s216
              $region61: #{tpu_custom_call.1} parent=54 // loop_footer_branch
                %215 = sbr.rel target = $region57
              $region62: #{tpu_custom_call.1} parent=54 // loop_exit
                _
            $region55: #{tpu_custom_call.1} parent=39 // pred_fallthru
              _
            %p255 = pneg %p211
            // Predicated region
            $region63: #{tpu_custom_call.1} parent=39 // pred_check
              _
            $region64: #{tpu_custom_call.1} parent=39 // pred_check_branch
              %257 = sbr.rel (%p211) target = $region66
            $region65: #{tpu_custom_call.1} parent=39 // pred_region
              %s258 = sand.u32 128, 7
            $region66: #{tpu_custom_call.1} parent=39 // pred_fallthru
              _
          $region40: #{tpu_custom_call.1} parent=35 // pred_fallthru
            _
          // Predicated region
          $region41: #{tpu_custom_call.1} parent=35 // pred_check
            %p196 = pneg %p192
          $region42: #{tpu_custom_call.1} parent=35 // pred_check_branch
            %198 = sbr.rel (%p196) target = $region44
          $region43: #{tpu_custom_call.1} parent=35 // pred_region
            %s199 = sshllo.u32 0, 128
            loop: start=0, step=1, limit=1
            $region45: #{tpu_custom_call.1} parent=43 // loop_pre_header
              _
            $region46: #{tpu_custom_call.1} parent=43 // loop_header
              %s201 = sphi 0, %s205
              %p202 = scmp.ge.s32.totalorder %s201, 1
              %s206 = sphi %s1, %s1
              %s207 = sphi [#allocation2], [#allocation2]
            $region47: #{tpu_custom_call.1} parent=43 // loop_header_branch
              %204 = sbr.rel (%p202) target = $region51
            $region48: #{tpu_custom_call.1} parent=43 // loop_body
              %v208 = vld [vmem:[%s206] sm:%s199]
              %209 = vst [vmem:[%s207] sm:%s199] %v208
            $region49: #{tpu_custom_call.1} parent=43 // loop_footer
              %s205 = sadd.s32 1, %s201
            $region50: #{tpu_custom_call.1} parent=43 // loop_footer_branch
              %200 = sbr.rel target = $region46
            $region51: #{tpu_custom_call.1} parent=43 // loop_exit
              _
          $region44: #{tpu_custom_call.1} parent=35 // pred_fallthru
            _
          // Predicated region
          $region67: #{tpu_custom_call.1} parent=35 // pred_check
            _
          $region68: #{tpu_custom_call.1} parent=35 // pred_check_branch
            %261 = sbr.rel (0) target = $region70
          $region69: #{tpu_custom_call.1} parent=35 // pred_region
            %262 = vsyncadd [#allocation5], 2048
          $region70: #{tpu_custom_call.1} parent=35 // pred_fallthru
            _
          %s263 = scalar_lea.sflag [#allocation5], 1
          %p265 = scmp.lt.u32.totalorder 16, 8
          %p266 = pneg %p265
          // Predicated region
          $region71: #{tpu_custom_call.1} parent=35 // pred_check
            _
          $region72: #{tpu_custom_call.1} parent=35 // pred_check_branch
            %268 = sbr.rel (%p265) target = $region74
          $region73: #{tpu_custom_call.1} parent=35 // pred_region
            %s283 = sand.u32 16, 7
            %p284 = scmp.eq.s32.totalorder %s283, 0
            // Predicated region
            $region86: #{tpu_custom_call.1} parent=73 // pred_check
              %p285 = pneg %p284
            $region87: #{tpu_custom_call.1} parent=73 // pred_check_branch
              %287 = sbr.rel (%p285) target = $region89
            $region88: #{tpu_custom_call.1} parent=73 // pred_region
              loop: start=0, step=1, limit=1
              $region90: #{tpu_custom_call.1} parent=88 // loop_pre_header
                _
              $region91: #{tpu_custom_call.1} parent=88 // loop_header
                %s289 = sphi 0, %s293
                %p290 = scmp.ge.s32.totalorder %s289, 1
                %s294 = sphi %s3, %s3
                %s295 = sphi [#allocation3], [#allocation3]
              $region92: #{tpu_custom_call.1} parent=88 // loop_header_branch
                %292 = sbr.rel (%p290) target = $region96
              $region93: #{tpu_custom_call.1} parent=88 // loop_body
                %v296 = vld [vmem:[%s294] sm:$0xff]
                %297 = vst [vmem:[%s295] sm:$0xff] %v296
                %v298 = vld [vmem:[%s294 + $0x8] sm:$0xff]
                %299 = vst [vmem:[%s295 + $0x8] sm:$0xff] %v298
              $region94: #{tpu_custom_call.1} parent=88 // loop_footer
                %s293 = sadd.s32 1, %s289
              $region95: #{tpu_custom_call.1} parent=88 // loop_footer_branch
                %288 = sbr.rel target = $region91
              $region96: #{tpu_custom_call.1} parent=88 // loop_exit
                _
            $region89: #{tpu_custom_call.1} parent=73 // pred_fallthru
              _
            %p300 = pneg %p284
            // Predicated region
            $region97: #{tpu_custom_call.1} parent=73 // pred_check
              _
            $region98: #{tpu_custom_call.1} parent=73 // pred_check_branch
              %302 = sbr.rel (%p284) target = $region100
            $region99: #{tpu_custom_call.1} parent=73 // pred_region
              %s303 = sand.u32 16, 7
            $region100: #{tpu_custom_call.1} parent=73 // pred_fallthru
              _
          $region74: #{tpu_custom_call.1} parent=35 // pred_fallthru
            _
          // Predicated region
          $region75: #{tpu_custom_call.1} parent=35 // pred_check
            %p269 = pneg %p265
          $region76: #{tpu_custom_call.1} parent=35 // pred_check_branch
            %271 = sbr.rel (%p269) target = $region78
          $region77: #{tpu_custom_call.1} parent=35 // pred_region
            %s272 = sshllo.u32 0, 16
            loop: start=0, step=1, limit=1
            $region79: #{tpu_custom_call.1} parent=77 // loop_pre_header
              _
            $region80: #{tpu_custom_call.1} parent=77 // loop_header
              %s274 = sphi 0, %s278
              %p275 = scmp.ge.s32.totalorder %s274, 1
              %s279 = sphi %s3, %s3
              %s280 = sphi [#allocation3], [#allocation3]
            $region81: #{tpu_custom_call.1} parent=77 // loop_header_branch
              %277 = sbr.rel (%p275) target = $region85
            $region82: #{tpu_custom_call.1} parent=77 // loop_body
              %v281 = vld [vmem:[%s279] sm:%s272]
              %282 = vst [vmem:[%s280] sm:%s272] %v281
            $region83: #{tpu_custom_call.1} parent=77 // loop_footer
              %s278 = sadd.s32 1, %s274
            $region84: #{tpu_custom_call.1} parent=77 // loop_footer_branch
              %273 = sbr.rel target = $region80
            $region85: #{tpu_custom_call.1} parent=77 // loop_exit
              _
          $region78: #{tpu_custom_call.1} parent=35 // pred_fallthru
            _
          // Predicated region
          $region101: #{tpu_custom_call.1} parent=35 // pred_check
            _
          $region102: #{tpu_custom_call.1} parent=35 // pred_check_branch
            %306 = sbr.rel (0) target = $region104
          $region103: #{tpu_custom_call.1} parent=35 // pred_region
            %307 = vsyncadd %s263, 256
          $region104: #{tpu_custom_call.1} parent=35 // pred_fallthru
            _
          %s308 = smul.u32 128, 1
          %s309 = sshll.u32 %s308, 4
          %310 = dma.done [#allocation5], %s309
          %s311 = smul.u32 16, 1
          %s312 = sshll.u32 %s311, 4
          %313 = dma.done %s263, %s312
          %vm314 = vcmask 130048
          %315 = vst.msk [vmem:[#allocation4] sm:$0xff] %vm314, 0.0
        $region36: #{tpu_custom_call.1} parent=31 // pred_fallthru
          _
        %v316 = vld [vmem:[%s185] sm:$0xff]
        %v317 = vld [vmem:[#allocation2] sm:$0xff]
        %v318 = vld [vmem:[#allocation2 + $0x8] sm:$0xff]
        %v319 = vld [vmem:[#allocation2 + $0x10] sm:$0xff]
        %v320 = vld [vmem:[#allocation2 + $0x18] sm:$0xff]
        %v321 = vld [vmem:[#allocation2 + $0x20] sm:$0xff]
        %v322 = vld [vmem:[#allocation2 + $0x28] sm:$0xff]
        %v323 = vld [vmem:[#allocation2 + $0x30] sm:$0xff]
        %v324 = vld [vmem:[#allocation2 + $0x38] sm:$0xff]
        %v325 = vld [vmem:[#allocation2 + $0x40] sm:$0xff]
        %v326 = vld [vmem:[#allocation2 + $0x48] sm:$0xff]
        %v327 = vld [vmem:[#allocation2 + $0x50] sm:$0xff]
        %v328 = vld [vmem:[#allocation2 + $0x58] sm:$0xff]
        %v329 = vld [vmem:[#allocation2 + $0x60] sm:$0xff]
        %v330 = vld [vmem:[#allocation2 + $0x68] sm:$0xff]
        %v331 = vld [vmem:[#allocation2 + $0x70] sm:$0xff]
        %v332 = vld [vmem:[#allocation2 + $0x78] sm:$0xff]
        %v333 = vld [vmem:[%s2] sm:$0x1]
        %v335 = vlaneseq
        %v336 = vshrl.u32 %v335, 7
        %v337 = vsub.s32 0, %v336
        %v338 = vrot.slane %v333, %v337
        %340 = vmatprep.subr.mxu0 0.0
        %341 = vmatpush1.msra.mxu0 %v317
        %342 = vmatprep.subr.mxu0 0.0
        %343 = vmatpush1.msra.mxu0 %v318
        %344 = vmatprep.subr.mxu0 0.0
        %345 = vmatpush1.msra.mxu0 %v319
        %346 = vmatprep.subr.mxu0 0.0
        %347 = vmatpush1.msra.mxu0 %v320
        %348 = vmatprep.subr.mxu0 0.0
        %349 = vmatpush1.msra.mxu0 %v321
        %350 = vmatprep.subr.mxu0 0.0
        %351 = vmatpush1.msra.mxu0 %v322
        %352 = vmatprep.subr.mxu0 0.0
        %353 = vmatpush1.msra.mxu0 %v323
        %354 = vmatprep.subr.mxu0 0.0
        %355 = vmatpush1.msra.mxu0 %v324
        %356 = vmatprep.subr.mxu0 0.0
        %357 = vmatpush1.msra.mxu0 %v325
        %358 = vmatprep.subr.mxu0 0.0
        %359 = vmatpush1.msra.mxu0 %v326
        %360 = vmatprep.subr.mxu0 0.0
        %361 = vmatpush1.msra.mxu0 %v327
        %362 = vmatprep.subr.mxu0 0.0
        %363 = vmatpush1.msra.mxu0 %v328
        %364 = vmatprep.subr.mxu0 0.0
        %365 = vmatpush1.msra.mxu0 %v329
        %366 = vmatprep.subr.mxu0 0.0
        %367 = vmatpush1.msra.mxu0 %v330
        %368 = vmatprep.subr.mxu0 0.0
        %369 = vmatpush1.msra.mxu0 %v331
        %370 = vmatprep.subr.mxu0 0.0
        %371 = vmatpush1.msra.mxu0 %v332
        %372 = vmatprep.subr.mxu0 0.0
        %373 = vmatpush1.msra.mxu0 0.0
        %374 = vmatprep.subr.mxu0 0.0
        %375 = vmatpush1.msra.mxu0 0.0
        %376 = vmatprep.subr.mxu0 0.0
        %377 = vmatpush1.msra.mxu0 0.0
        %378 = vmatprep.subr.mxu0 0.0
        %379 = vmatpush1.msra.mxu0 0.0
        %380 = vmatprep.subr.mxu0 0.0
        %381 = vmatpush1.msra.mxu0 0.0
        %382 = vmatprep.subr.mxu0 0.0
        %383 = vmatpush1.msra.mxu0 0.0
        %384 = vmatprep.subr.mxu0 0.0
        %385 = vmatpush1.msra.mxu0 0.0
        %386 = vmatprep.subr.mxu0 0.0
        %387 = vmatpush1.msra.mxu0 0.0
        %388 = vmatprep.subr.mxu0 0.0
        %389 = vmatpush1.msra.mxu0 0.0
        %390 = vmatprep.subr.mxu0 0.0
        %391 = vmatpush1.msra.mxu0 0.0
        %392 = vmatprep.subr.mxu0 0.0
        %393 = vmatpush1.msra.mxu0 0.0
        %394 = vmatprep.subr.mxu0 0.0
        %395 = vmatpush1.msra.mxu0 0.0
        %396 = vmatprep.subr.mxu0 0.0
        %397 = vmatpush1.msra.mxu0 0.0
        %398 = vmatprep.subr.mxu0 0.0
        %399 = vmatpush1.msra.mxu0 0.0
        %400 = vmatprep.subr.mxu0 0.0
        %401 = vmatpush1.msra.mxu0 0.0
        %402 = vmatprep.subr.mxu0 0.0
        %403 = vmatpush1.msra.mxu0 0.0
        %404 = vmatprep.mubr.f32.mxu0 0.0
        %405 = vmatmul.mubr.f32.gmra.mrb[0].mxu0 %v316
        %v406 = vpop.f32.mrb[0].mxu0
        %v407 = vadd.f32 %v338, %v406
        %v408 = vpop.f32.mrb[0].mxu0
        %409 = vdwg.mxu0
        %v410 = vmax.f32 %v407, 0.0
        %v411 = vld [vmem:[#allocation3] sm:$0xff]
        %v412 = vld [vmem:[#allocation3 + $0x8] sm:$0xff]
        %v413 = vld [vmem:[%s4] sm:$0x1]
        %v415 = vlaneseq
        %v416 = vshrl.u32 %v415, 7
        %v417 = vsub.s32 0, %v416
        %v418 = vrot.slane %v413, %v417
        %vm420 = vcmask 130048
        %v422 = vsel %vm420, %v410, 0
        %424 = vmatprep.subr.mxu0 0.0
        %425 = vmatpush1.msra.mxu0 %v411
        %426 = vmatprep.subr.mxu0 0.0
        %427 = vmatpush1.msra.mxu0 %v412
        %428 = vmatprep.subr.mxu0 0.0
        %429 = vmatpush1.msra.mxu0 0.0
        %430 = vmatprep.subr.mxu0 0.0
        %431 = vmatpush1.msra.mxu0 0.0
        %432 = vmatprep.subr.mxu0 0.0
        %433 = vmatpush1.msra.mxu0 0.0
        %434 = vmatprep.subr.mxu0 0.0
        %435 = vmatpush1.msra.mxu0 0.0
        %436 = vmatprep.subr.mxu0 0.0
        %437 = vmatpush1.msra.mxu0 0.0
        %438 = vmatprep.subr.mxu0 0.0
        %439 = vmatpush1.msra.mxu0 0.0
        %440 = vmatprep.subr.mxu0 0.0
        %441 = vmatpush1.msra.mxu0 0.0
        %442 = vmatprep.subr.mxu0 0.0
        %443 = vmatpush1.msra.mxu0 0.0
        %444 = vmatprep.subr.mxu0 0.0
        %445 = vmatpush1.msra.mxu0 0.0
        %446 = vmatprep.subr.mxu0 0.0
        %447 = vmatpush1.msra.mxu0 0.0
        %448 = vmatprep.subr.mxu0 0.0
        %449 = vmatpush1.msra.mxu0 0.0
        %450 = vmatprep.subr.mxu0 0.0
        %451 = vmatpush1.msra.mxu0 0.0
        %452 = vmatprep.subr.mxu0 0.0
        %453 = vmatpush1.msra.mxu0 0.0
        %454 = vmatprep.subr.mxu0 0.0
        %455 = vmatpush1.msra.mxu0 0.0
        %456 = vmatprep.subr.mxu0 0.0
        %457 = vmatpush1.msra.mxu0 0.0
        %458 = vmatprep.subr.mxu0 0.0
        %459 = vmatpush1.msra.mxu0 0.0
        %460 = vmatprep.subr.mxu0 0.0
        %461 = vmatpush1.msra.mxu0 0.0
        %462 = vmatprep.subr.mxu0 0.0
        %463 = vmatpush1.msra.mxu0 0.0
        %464 = vmatprep.subr.mxu0 0.0
        %465 = vmatpush1.msra.mxu0 0.0
        %466 = vmatprep.subr.mxu0 0.0
        %467 = vmatpush1.msra.mxu0 0.0
        %468 = vmatprep.subr.mxu0 0.0
        %469 = vmatpush1.msra.mxu0 0.0
        %470 = vmatprep.subr.mxu0 0.0
        %471 = vmatpush1.msra.mxu0 0.0
        %472 = vmatprep.subr.mxu0 0.0
        %473 = vmatpush1.msra.mxu0 0.0
        %474 = vmatprep.subr.mxu0 0.0
        %475 = vmatpush1.msra.mxu0 0.0
        %476 = vmatprep.subr.mxu0 0.0
        %477 = vmatpush1.msra.mxu0 0.0
        %478 = vmatprep.subr.mxu0 0.0
        %479 = vmatpush1.msra.mxu0 0.0
        %480 = vmatprep.subr.mxu0 0.0
        %481 = vmatpush1.msra.mxu0 0.0
        %482 = vmatprep.subr.mxu0 0.0
        %483 = vmatpush1.msra.mxu0 0.0
        %484 = vmatprep.subr.mxu0 0.0
        %485 = vmatpush1.msra.mxu0 0.0
        %486 = vmatprep.subr.mxu0 0.0
        %487 = vmatpush1.msra.mxu0 0.0
        %488 = vmatprep.mubr.f32.mxu0 0.0
        %489 = vmatmul.mubr.f32.gmra.mrb[0].mxu0 %v422
        %v490 = vpop.f32.mrb[0].mxu0
        %v491 = vadd.f32 %v418, %v490
        %v492 = vpop.f32.mrb[0].mxu0
        %493 = vdwg.mxu0
        %v494 = vmax.f32 %v491, 0.0
        %s495 = sadd.s32 %s23, %s24
        %s496 = smul.u32 %s495, 8
        %s497 = sadd.s32 %s496, 8
        %p498 = scmp.le.s32.totalorder %s497, 2
        // Predicated region
        $region105: #{tpu_custom_call.1} parent=31 // pred_check
          %p499 = pneg %p498
        $region106: #{tpu_custom_call.1} parent=31 // pred_check_branch
          %501 = sbr.rel (%p499) target = $region108
        $region107: #{tpu_custom_call.1} parent=31 // pred_region
          %v502 = vld [vmem:[#allocation4] sm:$0xff]
          %v503 = vadd.f32 %v502, %v494
          %504 = vst.msk [vmem:[#allocation4] sm:$0xff] %vm420, %v503
        $region108: #{tpu_custom_call.1} parent=31 // pred_fallthru
          _
        %p505 = scmp.gt.s32.totalorder %s497, 2
        // Predicated region
        $region109: #{tpu_custom_call.1} parent=31 // pred_check
          %p506 = pneg %p505
        $region110: #{tpu_custom_call.1} parent=31 // pred_check_branch
          %508 = sbr.rel (%p506) target = $region112
        $region111: #{tpu_custom_call.1} parent=31 // pred_region
          %v509 = vlaneseq
          %v510 = vshrl.u32 %v509, 7
          %v511 = vstv %s496
          %v512 = vadd.s32 %v511, %v510
          %vm513 = vcmp.lt.s32.totalorder %v512, 2
          %v514 = vsel %vm513, 1, 0
          %vm515 = vcmp.eq.s32.totalorder %v514, 1
          %v516 = vsel %vm515, %v494, 0.0
          %v517 = vld [vmem:[#allocation4] sm:$0xff]
          %v518 = vadd.f32 %v517, %v516
          %519 = vst.msk [vmem:[#allocation4] sm:$0xff] %vm420, %v518
        $region112: #{tpu_custom_call.1} parent=31 // pred_fallthru
          _
        // Predicated region
        $region113: #{tpu_custom_call.1} parent=31 // pred_check
          %p520 = pneg %p187
        $region114: #{tpu_custom_call.1} parent=31 // pred_check_branch
          %522 = sbr.rel (%p520) target = $region116
        $region115: #{tpu_custom_call.1} parent=31 // pred_region
          %v523 = vld [vmem:[#allocation4] sm:$0xff]
          %524 = vst.msk [vmem:[%s180] sm:$0xff] %vm420, %v523
        $region116: #{tpu_custom_call.1} parent=31 // pred_fallthru
          _
        %s525 = sand.u32 %s109, 1
        %s526 = scalar_lea.sflag [#allocation7], %s525
        %s527 = sand.u32 %s109, 1
        %s528 = smul.addr %s527, 8
        %s529 = scalar_lea.vmem [#allocation6], %s528
        // Predicated region
        $region117: #{tpu_custom_call.1} parent=31 // pred_check
          %p530 = pneg %p119
        $region118: #{tpu_custom_call.1} parent=31 // pred_check_branch
          %532 = sbr.rel (%p530) target = $region120
        $region119: #{tpu_custom_call.1} parent=31 // pred_region
          %s534 = ssub.s32 128, 128
          %535 = vsyncadd %s526, %s534
          %s536 = smul.addr %s23, 128
          %s537 = scalar_lea.hbm %s5, %s536
          %s539 = sshll.u32 %s529, 4
          %s540 = int_to_ptr.vmem [resolvable:$true] %s539
          %542 = dma.vmem_to_hbm [thread:$0]  %s540, 128, %s537, %s526
        $region120: #{tpu_custom_call.1} parent=31 // pred_fallthru
          _
      $region32: #{tpu_custom_call.1} parent=5 // pred_fallthru
        _
      %p543 = scmp.le.s32.totalorder 2, %s14
      // Predicated region
      $region121: #{tpu_custom_call.1} parent=5 // pred_check
        %p544 = pneg %p543
      $region122: #{tpu_custom_call.1} parent=5 // pred_check_branch
        %546 = sbr.rel (%p544) target = $region124
      $region123: #{tpu_custom_call.1} parent=5 // pred_region
        %s547 = ssub.s32 %s14, 2
        // Predicated region
        $region125: #{tpu_custom_call.1} parent=123 // pred_check
          %p548 = pneg %p125
        $region126: #{tpu_custom_call.1} parent=123 // pred_check_branch
          %550 = sbr.rel (%p548) target = $region128
        $region127: #{tpu_custom_call.1} parent=123 // pred_region
          %s551 = sand.u32 %s110, 1
          %s552 = scalar_lea.sflag [#allocation7], %s551
          %s553 = sand.u32 %s110, 1
          %s554 = smul.addr %s553, 8
          %s555 = scalar_lea.vmem [#allocation6], %s554
          %556 = dma.done %s552, 128
        $region128: #{tpu_custom_call.1} parent=123 // pred_fallthru
          _
      $region124: #{tpu_custom_call.1} parent=5 // pred_fallthru
        _
    $region6: #{tpu_custom_call.1} parent=1 // loop_footer
      %s18 = sadd.s32 1, %s14
    $region7: #{tpu_custom_call.1} parent=1 // loop_footer_branch
      %13 = sbr.rel target = $region3
    $region8: #{tpu_custom_call.1} parent=1 // loop_exit
      _
    %557 = vsyncpa [#allocation7], 1
    %s558 = scalar_lea.sflag [#allocation7], 1
    %559 = vsyncpa %s558, 1
  %560 = vsyncmov [#allocation5]
  %s561 = vpop.sfrf %560
  %p562 = scmp.eq.s32.totalorder %s561, 0
  %p563 = pneg %p562
  %565 = shalt.err (%p563)
  %s566 = scalar_lea.sflag [#allocation5], 1
  %567 = vsyncmov %s566
  %s568 = vpop.sfrf %567
  %p569 = scmp.eq.s32.totalorder %s568, 0
  %p570 = pneg %p569
  %572 = shalt.err (%p570)

</llo_original>
